<compile_context>
chip_gen: v5e
topology: v5e:2x2
jax: 0.10.0
libtpu: 0.0.40
codegen_flags: <defaults>
</compile_context>

<pallas_src>
import math
import functools

import jax
import jax.numpy as jnp
from jax import lax
from jax.experimental import pallas as pl
from jax.experimental.pallas import tpu as pltpu

KSIZE = 3
STRIDE = 2


def _same_pad_amounts(h, w):
    extra_h = max(0, (math.ceil(w / STRIDE) - 1) * STRIDE - w + KSIZE)
    extra_v = max(0, (math.ceil(h / STRIDE) - 1) * STRIDE - h + KSIZE)
    left = extra_h // 2
    right = extra_h - left
    top = extra_v // 2
    bottom = extra_v - top
    return top, bottom, left, right


def _tap_extent(k, pad_lo, n_in, n_out):
    """Valid (src_start, out_start, length) for window tap k along one dim.

    For k=3/s=2 "SAME" padding, at most the first and/or last output position
    of a tap falls into the zero padding; everything else is a dense stride-2
    read starting at `src_start`.
    """
    src = k - pad_lo
    out0 = 0
    if src < 0:              # first output position of this tap is in the pad
        src += STRIDE
        out0 = 1
    length = min(n_out - out0, (n_in - 1 - src) // STRIDE + 1)
    return src, out0, max(0, length)


def _maxpool_kernel(x_ref, o_ref, *, top, left, h, w, ho, wo):
    # x_ref: (H, W, TC) block, channels on lanes; o_ref: (Ho, Wo, TC).
    # When C % TC != 0 the last block's extra lanes hold undefined data; that
    # is harmless here (lanewise-independent op, OOB lanes masked on store).
    tc = x_ref.shape[-1]
    dt = x_ref.dtype

    acc = None
    needs_zero = False  # set when an entire tap lies in the zero padding
    for kh in range(KSIZE):
        rs, r0, lh = _tap_extent(kh, top, h, ho)
        if lh <= 0:
            needs_zero = True
            continue
        for kw in range(KSIZE):
            cs, c0, lw = _tap_extent(kw, left, w, wo)
            if lw <= 0:
                needs_zero = True
                continue
            # Strided read straight from the input ref: only lh*lw*TC elements
            # per tap, never the whole (padded) plane.  Stride-2 lands on the
            # H (outer) and W (sublane) axes; the lane (channel) axis is dense.
            t = x_ref[pl.ds(rs, lh, stride=STRIDE),
                      pl.ds(cs, lw, stride=STRIDE), :]
            # Extend partial taps with the actual "SAME" zero-padding values so
            # every tap has the full (Ho, Wo, TC) shape (at most one row and
            # one column per tap; no scatter / dynamic_update_slice needed).
            if c0:
                t = jnp.concatenate([jnp.zeros((lh, c0, tc), dt), t], axis=1)
            cr = wo - c0 - lw
            if cr:
                t = jnp.concatenate([t, jnp.zeros((lh, cr, tc), dt)], axis=1)
            if r0:
                t = jnp.concatenate([jnp.zeros((r0, wo, tc), dt), t], axis=0)
            rb = ho - r0 - lh
            if rb:
                t = jnp.concatenate([t, jnp.zeros((rb, wo, tc), dt)], axis=0)
            # Max stays in the native dtype (max is exact in any dtype).
            acc = t if acc is None else jnp.maximum(acc, t)

    if needs_zero:
        # Tiny-spatial case (h<=2 or w<=2): every window overlaps the padding.
        acc = jnp.maximum(acc, jnp.zeros((), dt))

    o_ref[...] = acc.astype(o_ref.dtype)  # lane-dense output store


def _pick_channel_tile(c, h, w, ho, wo, itemsize):
    """Channel tile for a pure streaming kernel (no cross-tile reuse).

    Target ~1-4 MiB per (in + out) block so the DMA/compute pipeline stays
    deep, and keep >=4 channel tiles when the channel axis is big enough
    (pipelining + megacore / v7x two-TensorCore splitting).
    """
    if c <= 256:
        # Full channel axis.  NOTE: for c < 128 every load/store is lane
        # masked (low utilization); callers with tiny C should fuse more
        # independent planes onto the lane axis (see the NCHW wrapper).
        return c
    per_c = (h * w + ho * wo) * itemsize
    target = 2 * 1024 * 1024
    tc = max(128, (target // per_c) // 128 * 128)
    tc = min(tc, max(128, (c // 4) // 128 * 128))
    return int(tc)


def maxpool2d_static_same_padding_nhwc(x):
    """x: (N, H, W, C) -> (N, Ho, Wo, C).  Zero-relayout (preferred) entry."""
    n, h, w, c = x.shape
    top, bottom, left, right = _same_pad_amounts(h, w)
    ho = (h + top + bottom - KSIZE) // STRIDE + 1
    wo = (w + left + right - KSIZE) // STRIDE + 1
    itemsize = jnp.dtype(x.dtype).itemsize
    tc = _pick_channel_tile(c, h, w, ho, wo, itemsize)

    kernel = functools.partial(_maxpool_kernel, top=top, left=left,
                               h=h, w=w, ho=ho, wo=wo)

    # TODO(synk): when N == 1 and C <= 128 the grid degenerates to a single
    # program (one idle TensorCore on v7x); an overlapping Ho-tile grid axis
    # would fix that but is not worth the halo complexity at these sizes.
    return pl.pallas_call(
        kernel,
        out_shape=jax.ShapeDtypeStruct((n, ho, wo, c), x.dtype),
        grid=(n, pl.cdiv(c, tc)),
        in_specs=[pl.BlockSpec((None, h, w, tc), lambda b, i: (b, 0, 0, i))],
        out_specs=pl.BlockSpec((None, ho, wo, tc), lambda b, i: (b, 0, 0, i)),
        compiler_params=pltpu.CompilerParams(
            dimension_semantics=("parallel", "parallel")),
        cost_estimate=pl.CostEstimate(
            flops=8 * n * c * ho * wo,
            transcendentals=0,
            bytes_accessed=n * c * (h * w + ho * wo) * itemsize),
    )(x)


def maxpool2d_static_same_padding(x):
    """x: (N, C, H, W) -> (N, C, Ho, Wo).  Matches the PyTorch module.

    The two relayouts below exist only for NCHW API compatibility (they fuse
    N*C onto the lane axis, which also fixes lane utilization for small C);
    prefer the NHWC entry point above when the surrounding model allows it.
    """
    n, c, h, w = x.shape
    x_t = jnp.transpose(x.reshape(n * c, h, w), (1, 2, 0))[None]   # (1,H,W,N*C)
    out_t = maxpool2d_static_same_padding_nhwc(x_t)                # (1,Ho,Wo,N*C)
    ho, wo = out_t.shape[1:3]
    return jnp.transpose(out_t[0], (2, 0, 1)).reshape(n, c, ho, wo)


def _reference_nchw(x):
    n, c, h, w = x.shape
    top, bottom, left, right = _same_pad_amounts(h, w)
    xp = jnp.pad(x, ((0, 0), (0, 0), (top, bottom), (left, right)))
    return lax.reduce_window(
        xp, -jnp.inf, lax.max,
        window_dimensions=(1, 1, KSIZE, KSIZE),
        window_strides=(1, 1, STRIDE, STRIDE),
        padding="VALID",
    )


if __name__ == "__main__":
    key = jax.random.PRNGKey(0)
    k1, k2, k3 = jax.random.split(key, 3)

    # NCHW (module-compatible) path, even spatial dims (pad: bottom/right only).
    x1 = jax.random.normal(k1, (2, 4, 16, 16), dtype=jnp.float32)
    o1 = jax.block_until_ready(maxpool2d_static_same_padding(x1))
    r1 = _reference_nchw(x1)
    assert o1.shape == (2, 4, 8, 8), o1.shape
    assert jnp.allclose(o1, r1), "NCHW even-size mismatch vs reference"

    # NCHW path, odd spatial dims (exercises top/left padding as well).
    x2 = jax.random.normal(k2, (1, 3, 15, 17), dtype=jnp.float32)
    o2 = jax.block_until_ready(maxpool2d_static_same_padding(x2))
    r2 = _reference_nchw(x2)
    assert o2.shape == r2.shape, (o2.shape, r2.shape)
    assert jnp.allclose(o2, r2), "NCHW odd-size mismatch vs reference"

    # NHWC (relayout-free) path.
    x3 = jax.random.normal(k3, (2, 16, 16, 4), dtype=jnp.float32)
    o3 = jax.block_until_ready(maxpool2d_static_same_padding_nhwc(x3))
    r3 = jnp.transpose(
        _reference_nchw(jnp.transpose(x3, (0, 3, 1, 2))), (0, 2, 3, 1))
    assert o3.shape == (2, 8, 8, 4), o3.shape
    assert jnp.allclose(o3, r3), "NHWC mismatch vs reference"

    print("KERNEL_OK")
</pallas_src>

<mosaic_0001>
module attributes {stable_mosaic.version = 11 : i64} {
  func.func @_maxpool_kernel(%arg0: i32, %arg1: i32, %arg2: memref<1x16x16x8xf32, #tpu.memory_space<vmem>>, %arg3: memref<1x8x8x8xf32, #tpu.memory_space<vmem>>) attributes {dimension_semantics = [#tpu.dimension_semantics<parallel>, #tpu.dimension_semantics<parallel>], iteration_bounds = array<i64: 1, 1>, scalar_prefetch = 0 : i64, scratch_operands = 0 : i64, tpu.core_type = #tpu.core_type<tc>, window_params = [{transform_indices = @transform_0, window_bounds = array<i64: 1, 16, 16, 8>}, {transform_indices = @transform_1, window_bounds = array<i64: 1, 8, 8, 8>}]} {
    %c0 = arith.constant 0 : index
    %c0_0 = arith.constant 0 : index
    %c0_1 = arith.constant 0 : index
    %c0_2 = arith.constant 0 : index
    %0 = tpu.strided_load %arg2[%c0, %c0_0, %c0_1, %c0_2] {strides = array<i32: 1, 2, 2, 1>} : memref<1x16x16x8xf32, #tpu.memory_space<vmem>>, vector<1x8x8x8xf32>
    %1 = vector.shape_cast %0 : vector<1x8x8x8xf32> to vector<8x8x8xf32>
    %c0_3 = arith.constant 0 : index
    %c0_4 = arith.constant 0 : index
    %c1 = arith.constant 1 : index
    %c0_5 = arith.constant 0 : index
    %2 = tpu.strided_load %arg2[%c0_3, %c0_4, %c1, %c0_5] {strides = array<i32: 1, 2, 2, 1>} : memref<1x16x16x8xf32, #tpu.memory_space<vmem>>, vector<1x8x8x8xf32>
    %3 = vector.shape_cast %2 : vector<1x8x8x8xf32> to vector<8x8x8xf32>
    %4 = arith.maximumf %1, %3 : vector<8x8x8xf32>
    %c0_6 = arith.constant 0 : index
    %c0_7 = arith.constant 0 : index
    %c2 = arith.constant 2 : index
    %c0_8 = arith.constant 0 : index
    %5 = tpu.strided_load %arg2[%c0_6, %c0_7, %c2, %c0_8] {strides = array<i32: 1, 2, 2, 1>} : memref<1x16x16x8xf32, #tpu.memory_space<vmem>>, vector<1x8x7x8xf32>
    %6 = vector.shape_cast %5 : vector<1x8x7x8xf32> to vector<8x7x8xf32>
    %cst = arith.constant 0.000000e+00 : f32
    %7 = vector.broadcast %cst : f32 to vector<8x1x8xf32>
    %8 = tpu.concatenate %6, %7 in 1 : vector<8x7x8xf32>, vector<8x1x8xf32> -> vector<8x8x8xf32>
    %9 = arith.maximumf %4, %8 : vector<8x8x8xf32>
    %c0_9 = arith.constant 0 : index
    %c1_10 = arith.constant 1 : index
    %c0_11 = arith.constant 0 : index
    %c0_12 = arith.constant 0 : index
    %10 = tpu.strided_load %arg2[%c0_9, %c1_10, %c0_11, %c0_12] {strides = array<i32: 1, 2, 2, 1>} : memref<1x16x16x8xf32, #tpu.memory_space<vmem>>, vector<1x8x8x8xf32>
    %11 = vector.shape_cast %10 : vector<1x8x8x8xf32> to vector<8x8x8xf32>
    %12 = arith.maximumf %9, %11 : vector<8x8x8xf32>
    %c0_13 = arith.constant 0 : index
    %c1_14 = arith.constant 1 : index
    %c1_15 = arith.constant 1 : index
    %c0_16 = arith.constant 0 : index
    %13 = tpu.strided_load %arg2[%c0_13, %c1_14, %c1_15, %c0_16] {strides = array<i32: 1, 2, 2, 1>} : memref<1x16x16x8xf32, #tpu.memory_space<vmem>>, vector<1x8x8x8xf32>
    %14 = vector.shape_cast %13 : vector<1x8x8x8xf32> to vector<8x8x8xf32>
    %15 = arith.maximumf %12, %14 : vector<8x8x8xf32>
    %c0_17 = arith.constant 0 : index
    %c1_18 = arith.constant 1 : index
    %c2_19 = arith.constant 2 : index
    %c0_20 = arith.constant 0 : index
    %16 = tpu.strided_load %arg2[%c0_17, %c1_18, %c2_19, %c0_20] {strides = array<i32: 1, 2, 2, 1>} : memref<1x16x16x8xf32, #tpu.memory_space<vmem>>, vector<1x8x7x8xf32>
    %17 = vector.shape_cast %16 : vector<1x8x7x8xf32> to vector<8x7x8xf32>
    %cst_21 = arith.constant 0.000000e+00 : f32
    %18 = vector.broadcast %cst_21 : f32 to vector<8x1x8xf32>
    %19 = tpu.concatenate %17, %18 in 1 : vector<8x7x8xf32>, vector<8x1x8xf32> -> vector<8x8x8xf32>
    %20 = arith.maximumf %15, %19 : vector<8x8x8xf32>
    %c0_22 = arith.constant 0 : index
    %c2_23 = arith.constant 2 : index
    %c0_24 = arith.constant 0 : index
    %c0_25 = arith.constant 0 : index
    %21 = tpu.strided_load %arg2[%c0_22, %c2_23, %c0_24, %c0_25] {strides = array<i32: 1, 2, 2, 1>} : memref<1x16x16x8xf32, #tpu.memory_space<vmem>>, vector<1x7x8x8xf32>
    %22 = vector.shape_cast %21 : vector<1x7x8x8xf32> to vector<7x8x8xf32>
    %cst_26 = arith.constant 0.000000e+00 : f32
    %23 = vector.broadcast %cst_26 : f32 to vector<1x8x8xf32>
    %24 = tpu.concatenate %22, %23 in 0 : vector<7x8x8xf32>, vector<1x8x8xf32> -> vector<8x8x8xf32>
    %25 = arith.maximumf %20, %24 : vector<8x8x8xf32>
    %c0_27 = arith.constant 0 : index
    %c2_28 = arith.constant 2 : index
    %c1_29 = arith.constant 1 : index
    %c0_30 = arith.constant 0 : index
    %26 = tpu.strided_load %arg2[%c0_27, %c2_28, %c1_29, %c0_30] {strides = array<i32: 1, 2, 2, 1>} : memref<1x16x16x8xf32, #tpu.memory_space<vmem>>, vector<1x7x8x8xf32>
    %27 = vector.shape_cast %26 : vector<1x7x8x8xf32> to vector<7x8x8xf32>
    %cst_31 = arith.constant 0.000000e+00 : f32
    %28 = vector.broadcast %cst_31 : f32 to vector<1x8x8xf32>
    %29 = tpu.concatenate %27, %28 in 0 : vector<7x8x8xf32>, vector<1x8x8xf32> -> vector<8x8x8xf32>
    %30 = arith.maximumf %25, %29 : vector<8x8x8xf32>
    %c0_32 = arith.constant 0 : index
    %c2_33 = arith.constant 2 : index
    %c2_34 = arith.constant 2 : index
    %c0_35 = arith.constant 0 : index
    %31 = tpu.strided_load %arg2[%c0_32, %c2_33, %c2_34, %c0_35] {strides = array<i32: 1, 2, 2, 1>} : memref<1x16x16x8xf32, #tpu.memory_space<vmem>>, vector<1x7x7x8xf32>
    %32 = vector.shape_cast %31 : vector<1x7x7x8xf32> to vector<7x7x8xf32>
    %cst_36 = arith.constant 0.000000e+00 : f32
    %33 = vector.broadcast %cst_36 : f32 to vector<7x1x8xf32>
    %34 = tpu.concatenate %32, %33 in 1 : vector<7x7x8xf32>, vector<7x1x8xf32> -> vector<7x8x8xf32>
    %cst_37 = arith.constant 0.000000e+00 : f32
    %35 = vector.broadcast %cst_37 : f32 to vector<1x8x8xf32>
    %36 = tpu.concatenate %34, %35 in 0 : vector<7x8x8xf32>, vector<1x8x8xf32> -> vector<8x8x8xf32>
    %37 = arith.maximumf %30, %36 : vector<8x8x8xf32>
    %c0_38 = arith.constant 0 : index
    %c0_39 = arith.constant 0 : index
    %c0_40 = arith.constant 0 : index
    %c0_41 = arith.constant 0 : index
    %38 = vector.load %arg3[%c0_38, %c0_39, %c0_40, %c0_41] : memref<1x8x8x8xf32, #tpu.memory_space<vmem>>, vector<1x8x8x8xf32>
    %39 = vector.shape_cast %38 : vector<1x8x8x8xf32> to vector<8x8x8xf32>
    %40 = vector.shape_cast %37 : vector<8x8x8xf32> to vector<1x8x8x8xf32>
    tpu.vector_store %arg3[%c0_38, %c0_39, %c0_40, %c0_41], %40 {strides = array<i32>} : memref<1x8x8x8xf32, #tpu.memory_space<vmem>>, vector<1x8x8x8xf32>,
    return
  }
  func.func @transform_0(%arg0: i32, %arg1: i32) -> (i32, i32, i32, i32) {
    %c0_i32 = arith.constant 0 : i32
    %c0_i32_0 = arith.constant 0 : i32
    %c0_i32_1 = arith.constant 0 : i32
    return %arg0, %c0_i32, %c0_i32_0, %arg1 : i32, i32, i32, i32
  }
  func.func @transform_1(%arg0: i32, %arg1: i32) -> (i32, i32, i32, i32) {
    %c0_i32 = arith.constant 0 : i32
    %c0_i32_0 = arith.constant 0 : i32
    %c0_i32_1 = arith.constant 0 : i32
    return %arg0, %c0_i32, %c0_i32_0, %arg1 : i32, i32, i32, i32
  }
}

</mosaic_0001>

<llo_original>
// kernel: tpu_custom_call.1
$region0: #{tpu_custom_call.1}
  #allocation0 [shape = 'u32[]', space=smem, size = 0x4, offset = 0x4, fixed_abs, tag = 'smem constant byte address 0x4 - core index']
  #allocation1 [shape = 'u32[72,128]{1,0:T(1,128)}', space=vmem, size = 0x9000, scoped, tag = 'internal scratch']
  %s0 = inlined_call_operand.vmem [shape: f32[1,16,16,8], index: 0, kind: input, shape index: {}]
  %s1 = inlined_call_operand.hbm [shape: f32[1,8,8,8], index: 1, kind: output, shape index: {}]
  %s2 = sld [smem:[#allocation0]]
  $region14: #{tpu_custom_call.1} parent=0
    _
  %s4 = ssub.s32 1, %s2
  %s5 = scalar_select 0, %s4, %s2
  $region1: #{tpu_custom_call.1} parent=0
    #allocation2 [shape = 'u8[32768]{0}', space=vmem, size = 0x8000, scoped, tag = 'output window, operand 0, single buffered']
    #allocation3 [shape = 's32[1]{0}', space=sflag, size = 0x4, scoped, tag = 'scoped memory for tpu_custom_call.1']
    %6 = vsyncpa [#allocation3], 0
    // Predicated region
    $region2: #{tpu_custom_call.1} parent=1 // pred_check
      _
    $region3: #{tpu_custom_call.1} parent=1 // pred_check_branch
      %8 = sbr.rel (0) target = $region5
    $region4: #{tpu_custom_call.1} parent=1 // pred_region
      _
    $region5: #{tpu_custom_call.1} parent=1 // pred_fallthru
      _
    %v9 = vld [vmem:[%s0] ss:$2 sm:$0xff]
    %s10 = scalar_lea.vmem %s0, 32
    %v11 = vld [vmem:[%s10] ss:$2 sm:$0xff]
    %s12 = scalar_lea.vmem %s0, 64
    %v13 = vld [vmem:[%s12] ss:$2 sm:$0xff]
    %s14 = scalar_lea.vmem %s0, 96
    %v15 = vld [vmem:[%s14] ss:$2 sm:$0xff]
    %s16 = scalar_lea.vmem %s0, 128
    %v17 = vld [vmem:[%s16] ss:$2 sm:$0xff]
    %s18 = scalar_lea.vmem %s0, 160
    %v19 = vld [vmem:[%s18] ss:$2 sm:$0xff]
    %s20 = scalar_lea.vmem %s0, 192
    %v21 = vld [vmem:[%s20] ss:$2 sm:$0xff]
    %s22 = scalar_lea.vmem %s0, 224
    %v23 = vld [vmem:[%s22] ss:$2 sm:$0xff]
    %s24 = scalar_lea.vmem %s0, 1
    %v25 = vld [vmem:[%s24] ss:$2 sm:$0xff]
    %s26 = scalar_lea.vmem %s0, 33
    %v27 = vld [vmem:[%s26] ss:$2 sm:$0xff]
    %s28 = scalar_lea.vmem %s0, 65
    %v29 = vld [vmem:[%s28] ss:$2 sm:$0xff]
    %s30 = scalar_lea.vmem %s0, 97
    %v31 = vld [vmem:[%s30] ss:$2 sm:$0xff]
    %s32 = scalar_lea.vmem %s0, 129
    %v33 = vld [vmem:[%s32] ss:$2 sm:$0xff]
    %s34 = scalar_lea.vmem %s0, 161
    %v35 = vld [vmem:[%s34] ss:$2 sm:$0xff]
    %s36 = scalar_lea.vmem %s0, 193
    %v37 = vld [vmem:[%s36] ss:$2 sm:$0xff]
    %s38 = scalar_lea.vmem %s0, 225
    %v39 = vld [vmem:[%s38] ss:$2 sm:$0xff]
    %v40 = vmax.f32 %v9, %v25
    %v41 = vmax.f32 %v11, %v27
    %v42 = vmax.f32 %v13, %v29
    %v43 = vmax.f32 %v15, %v31
    %v44 = vmax.f32 %v17, %v33
    %v45 = vmax.f32 %v19, %v35
    %v46 = vmax.f32 %v21, %v37
    %v47 = vmax.f32 %v23, %v39
    %s48 = scalar_lea.vmem %s0, 2
    %v49 = vld [vmem:[%s48] ss:$2 sm:$0x7f]
    %s50 = scalar_lea.vmem %s0, 34
    %v51 = vld [vmem:[%s50] ss:$2 sm:$0x7f]
    %s52 = scalar_lea.vmem %s0, 66
    %v53 = vld [vmem:[%s52] ss:$2 sm:$0x7f]
    %s54 = scalar_lea.vmem %s0, 98
    %v55 = vld [vmem:[%s54] ss:$2 sm:$0x7f]
    %s56 = scalar_lea.vmem %s0, 130
    %v57 = vld [vmem:[%s56] ss:$2 sm:$0x7f]
    %s58 = scalar_lea.vmem %s0, 162
    %v59 = vld [vmem:[%s58] ss:$2 sm:$0x7f]
    %s60 = scalar_lea.vmem %s0, 194
    %v61 = vld [vmem:[%s60] ss:$2 sm:$0x7f]
    %s62 = scalar_lea.vmem %s0, 226
    %v63 = vld [vmem:[%s62] ss:$2 sm:$0x7f]
    %vm64 = vcmask 1046528
    %v65 = vsel %vm64, %v49, 0.0
    %v66 = vsel %vm64, %v51, 0.0
    %v67 = vsel %vm64, %v53, 0.0
    %v68 = vsel %vm64, %v55, 0.0
    %v69 = vsel %vm64, %v57, 0.0
    %v70 = vsel %vm64, %v59, 0.0
    %v71 = vsel %vm64, %v61, 0.0
    %v72 = vsel %vm64, %v63, 0.0
    %v73 = vmax.f32 %v40, %v65
    %v74 = vmax.f32 %v41, %v66
    %v75 = vmax.f32 %v42, %v67
    %v76 = vmax.f32 %v43, %v68
    %v77 = vmax.f32 %v44, %v69
    %v78 = vmax.f32 %v45, %v70
    %v79 = vmax.f32 %v46, %v71
    %v80 = vmax.f32 %v47, %v72
    %s81 = scalar_lea.vmem %s0, 16
    %v82 = vld [vmem:[%s81] ss:$2 sm:$0xff]
    %s83 = scalar_lea.vmem %s81, 32
    %v84 = vld [vmem:[%s83] ss:$2 sm:$0xff]
    %s85 = scalar_lea.vmem %s81, 64
    %v86 = vld [vmem:[%s85] ss:$2 sm:$0xff]
    %s87 = scalar_lea.vmem %s81, 96
    %v88 = vld [vmem:[%s87] ss:$2 sm:$0xff]
    %s89 = scalar_lea.vmem %s81, 128
    %v90 = vld [vmem:[%s89] ss:$2 sm:$0xff]
    %s91 = scalar_lea.vmem %s81, 160
    %v92 = vld [vmem:[%s91] ss:$2 sm:$0xff]
    %s93 = scalar_lea.vmem %s81, 192
    %v94 = vld [vmem:[%s93] ss:$2 sm:$0xff]
    %s95 = scalar_lea.vmem %s81, 224
    %v96 = vld [vmem:[%s95] ss:$2 sm:$0xff]
    %v97 = vmax.f32 %v73, %v82
    %v98 = vmax.f32 %v74, %v84
    %v99 = vmax.f32 %v75, %v86
    %v100 = vmax.f32 %v76, %v88
    %v101 = vmax.f32 %v77, %v90
    %v102 = vmax.f32 %v78, %v92
    %v103 = vmax.f32 %v79, %v94
    %v104 = vmax.f32 %v80, %v96
    %s105 = scalar_lea.vmem %s81, 1
    %v106 = vld [vmem:[%s105] ss:$2 sm:$0xff]
    %s107 = scalar_lea.vmem %s81, 33
    %v108 = vld [vmem:[%s107] ss:$2 sm:$0xff]
    %s109 = scalar_lea.vmem %s81, 65
    %v110 = vld [vmem:[%s109] ss:$2 sm:$0xff]
    %s111 = scalar_lea.vmem %s81, 97
    %v112 = vld [vmem:[%s111] ss:$2 sm:$0xff]
    %s113 = scalar_lea.vmem %s81, 129
    %v114 = vld [vmem:[%s113] ss:$2 sm:$0xff]
    %s115 = scalar_lea.vmem %s81, 161
    %v116 = vld [vmem:[%s115] ss:$2 sm:$0xff]
    %s117 = scalar_lea.vmem %s81, 193
    %v118 = vld [vmem:[%s117] ss:$2 sm:$0xff]
    %s119 = scalar_lea.vmem %s81, 225
    %v120 = vld [vmem:[%s119] ss:$2 sm:$0xff]
    %v121 = vmax.f32 %v97, %v106
    %v122 = vmax.f32 %v98, %v108
    %v123 = vmax.f32 %v99, %v110
    %v124 = vmax.f32 %v100, %v112
    %v125 = vmax.f32 %v101, %v114
    %v126 = vmax.f32 %v102, %v116
    %v127 = vmax.f32 %v103, %v118
    %v128 = vmax.f32 %v104, %v120
    %s129 = scalar_lea.vmem %s81, 2
    %v130 = vld [vmem:[%s129] ss:$2 sm:$0x7f]
    %s131 = scalar_lea.vmem %s81, 34
    %v132 = vld [vmem:[%s131] ss:$2 sm:$0x7f]
    %s133 = scalar_lea.vmem %s81, 66
    %v134 = vld [vmem:[%s133] ss:$2 sm:$0x7f]
    %s135 = scalar_lea.vmem %s81, 98
    %v136 = vld [vmem:[%s135] ss:$2 sm:$0x7f]
    %s137 = scalar_lea.vmem %s81, 130
    %v138 = vld [vmem:[%s137] ss:$2 sm:$0x7f]
    %s139 = scalar_lea.vmem %s81, 162
    %v140 = vld [vmem:[%s139] ss:$2 sm:$0x7f]
    %s141 = scalar_lea.vmem %s81, 194
    %v142 = vld [vmem:[%s141] ss:$2 sm:$0x7f]
    %s143 = scalar_lea.vmem %s81, 226
    %v144 = vld [vmem:[%s143] ss:$2 sm:$0x7f]
    %v145 = vsel %vm64, %v130, 0.0
    %v146 = vsel %vm64, %v132, 0.0
    %v147 = vsel %vm64, %v134, 0.0
    %v148 = vsel %vm64, %v136, 0.0
    %v149 = vsel %vm64, %v138, 0.0
    %v150 = vsel %vm64, %v140, 0.0
    %v151 = vsel %vm64, %v142, 0.0
    %v152 = vsel %vm64, %v144, 0.0
    %v153 = vmax.f32 %v121, %v145
    %v154 = vmax.f32 %v122, %v146
    %v155 = vmax.f32 %v123, %v147
    %v156 = vmax.f32 %v124, %v148
    %v157 = vmax.f32 %v125, %v149
    %v158 = vmax.f32 %v126, %v150
    %v159 = vmax.f32 %v127, %v151
    %v160 = vmax.f32 %v128, %v152
    %s161 = scalar_lea.vmem %s0, 32
    %v162 = vld [vmem:[%s161] ss:$2 sm:$0xff]
    %s163 = scalar_lea.vmem %s161, 32
    %v164 = vld [vmem:[%s163] ss:$2 sm:$0xff]
    %s165 = scalar_lea.vmem %s161, 64
    %v166 = vld [vmem:[%s165] ss:$2 sm:$0xff]
    %s167 = scalar_lea.vmem %s161, 96
    %v168 = vld [vmem:[%s167] ss:$2 sm:$0xff]
    %s169 = scalar_lea.vmem %s161, 128
    %v170 = vld [vmem:[%s169] ss:$2 sm:$0xff]
    %s171 = scalar_lea.vmem %s161, 160
    %v172 = vld [vmem:[%s171] ss:$2 sm:$0xff]
    %s173 = scalar_lea.vmem %s161, 192
    %v174 = vld [vmem:[%s173] ss:$2 sm:$0xff]
    %v175 = vmax.f32 %v153, %v162
    %v176 = vmax.f32 %v154, %v164
    %v177 = vmax.f32 %v155, %v166
    %v178 = vmax.f32 %v156, %v168
    %v179 = vmax.f32 %v157, %v170
    %v180 = vmax.f32 %v158, %v172
    %v181 = vmax.f32 %v159, %v174
    %v182 = vmax.f32 %v160, 0.0
    %s183 = scalar_lea.vmem %s161, 1
    %v184 = vld [vmem:[%s183] ss:$2 sm:$0xff]
    %s185 = scalar_lea.vmem %s161, 33
    %v186 = vld [vmem:[%s185] ss:$2 sm:$0xff]
    %s187 = scalar_lea.vmem %s161, 65
    %v188 = vld [vmem:[%s187] ss:$2 sm:$0xff]
    %s189 = scalar_lea.vmem %s161, 97
    %v190 = vld [vmem:[%s189] ss:$2 sm:$0xff]
    %s191 = scalar_lea.vmem %s161, 129
    %v192 = vld [vmem:[%s191] ss:$2 sm:$0xff]
    %s193 = scalar_lea.vmem %s161, 161
    %v194 = vld [vmem:[%s193] ss:$2 sm:$0xff]
    %s195 = scalar_lea.vmem %s161, 193
    %v196 = vld [vmem:[%s195] ss:$2 sm:$0xff]
    %v197 = vmax.f32 %v175, %v184
    %v198 = vmax.f32 %v176, %v186
    %v199 = vmax.f32 %v177, %v188
    %v200 = vmax.f32 %v178, %v190
    %v201 = vmax.f32 %v179, %v192
    %v202 = vmax.f32 %v180, %v194
    %v203 = vmax.f32 %v181, %v196
    %v204 = vmax.f32 %v182, 0.0
    %s205 = scalar_lea.vmem %s161, 2
    %v206 = vld [vmem:[%s205] ss:$2 sm:$0x7f]
    %s207 = scalar_lea.vmem %s161, 34
    %v208 = vld [vmem:[%s207] ss:$2 sm:$0x7f]
    %s209 = scalar_lea.vmem %s161, 66
    %v210 = vld [vmem:[%s209] ss:$2 sm:$0x7f]
    %s211 = scalar_lea.vmem %s161, 98
    %v212 = vld [vmem:[%s211] ss:$2 sm:$0x7f]
    %s213 = scalar_lea.vmem %s161, 130
    %v214 = vld [vmem:[%s213] ss:$2 sm:$0x7f]
    %s215 = scalar_lea.vmem %s161, 162
    %v216 = vld [vmem:[%s215] ss:$2 sm:$0x7f]
    %s217 = scalar_lea.vmem %s161, 194
    %v218 = vld [vmem:[%s217] ss:$2 sm:$0x7f]
    %v219 = vsel %vm64, %v206, 0.0
    %v220 = vsel %vm64, %v208, 0.0
    %v221 = vsel %vm64, %v210, 0.0
    %v222 = vsel %vm64, %v212, 0.0
    %v223 = vsel %vm64, %v214, 0.0
    %v224 = vsel %vm64, %v216, 0.0
    %v225 = vsel %vm64, %v218, 0.0
    %v226 = vmax.f32 %v197, %v219
    %v227 = vmax.f32 %v198, %v220
    %v228 = vmax.f32 %v199, %v221
    %v229 = vmax.f32 %v200, %v222
    %v230 = vmax.f32 %v201, %v223
    %v231 = vmax.f32 %v202, %v224
    %v232 = vmax.f32 %v203, %v225
    %v233 = vmax.f32 %v204, 0.0
    %vm234 = vcmask 64512
    %235 = vst.msk [vmem:[#allocation2] sm:$0xff] %vm234, %v226
    %236 = vst.msk [vmem:[#allocation2 + $0x8] sm:$0xff] %vm234, %v227
    %237 = vst.msk [vmem:[#allocation2 + $0x10] sm:$0xff] %vm234, %v228
    %238 = vst.msk [vmem:[#allocation2 + $0x18] sm:$0xff] %vm234, %v229
    %239 = vst.msk [vmem:[#allocation2 + $0x20] sm:$0xff] %vm234, %v230
    %240 = vst.msk [vmem:[#allocation2 + $0x28] sm:$0xff] %vm234, %v231
    %241 = vst.msk [vmem:[#allocation2 + $0x30] sm:$0xff] %vm234, %v232
    %242 = vst.msk [vmem:[#allocation2 + $0x38] sm:$0xff] %vm234, %v233
    // Predicated region
    $region6: #{tpu_custom_call.1} parent=1 // pred_check
      _
    $region7: #{tpu_custom_call.1} parent=1 // pred_check_branch
      %244 = sbr.rel (0) target = $region9
    $region8: #{tpu_custom_call.1} parent=1 // pred_region
      %246 = vsyncadd [#allocation3], 0
      %s247 = sshll.u32 [#allocation2], 4
      %s248 = int_to_ptr.vmem [resolvable:$true] %s247
      %s249 = sshll.u32 %s1, 4
      %s250 = int_to_ptr.hbm [resolvable:$true] %s249
      %255 = dma.vmem_to_hbm [thread:$0]  %s248, 1024, %s250, [#allocation3], 128, 128, 8
    $region9: #{tpu_custom_call.1} parent=1 // pred_fallthru
      _
    // Predicated region
    $region10: #{tpu_custom_call.1} parent=1 // pred_check
      _
    $region11: #{tpu_custom_call.1} parent=1 // pred_check_branch
      %257 = sbr.rel (0) target = $region13
    $region12: #{tpu_custom_call.1} parent=1 // pred_region
      %259 = dma.done [#allocation3], 1024
    $region13: #{tpu_custom_call.1} parent=1 // pred_fallthru
      _
    %260 = vsyncpa [#allocation3], 1

</llo_original>
